<compile_context>
chip_gen: v7x
topology: tpu7x:2x2x1
jax: 0.10.0
libtpu: 0.0.40
codegen_flags: <defaults>
</compile_context>

<pallas_src>
import functools

import jax
import jax.numpy as jnp
from jax import lax
from jax.experimental import pallas as pl
from jax.experimental.pallas import tpu as pltpu

_EPSILON = 1e-05


def _ace_kernel(w_ref, logits_ref, targets_ref, out_ref, acc_ref, *,
                total_b, labels_mode, has_tail):
    """One batch tile: log-softmax + CE accumulation; finalize on last step."""
    f32 = jnp.float32
    i = pl.program_id(0)
    tile_b, c = logits_ref.shape

    @pl.when(i == 0)
    def _():
        acc_ref[...] = jnp.zeros_like(acc_ref)

    logits = logits_ref[...].astype(f32)

    # log_softmax over the class (lane) axis.
    m = jnp.max(logits, axis=1, keepdims=True)
    shifted = logits - m
    lse = jnp.log(jnp.sum(jnp.exp(shifted), axis=1, keepdims=True))
    log_prob = shifted - lse                                   # (tile_b, C)

    if labels_mode:
        lbl = targets_ref[...]                                 # (tile_b, 1) int32
        class_ids = lax.broadcasted_iota(jnp.int32, (tile_b, c), 1)
        onehot = (class_ids == lbl).astype(f32)
    else:
        onehot = targets_ref[...].astype(f32)

    contrib = onehot * log_prob                                # (tile_b, C)

    if has_tail:
        # Only the last (partial) tile has invalid rows; masking the
        # contribution (not the inputs) is NaN-safe for the padded HBM block.
        row_ids = lax.broadcasted_iota(jnp.int32, (tile_b, c), 0) + i * tile_b
        contrib = jnp.where(row_ids < total_b, contrib, 0.0)

    if tile_b % 8 == 0:
        # Fold the tile into 8 sublane rows with plain vreg adds; the single
        # cross-sublane reduction happens once in the finalize.
        acc_ref[...] += contrib.reshape(tile_b // 8, 8, c).sum(axis=0)
    else:
        acc_ref[...] += jnp.sum(contrib, axis=0, keepdims=True)

    @pl.when(i == pl.num_programs(0) - 1)
    def _():
        mean_ce = jnp.sum(acc_ref[...], axis=0, keepdims=True) * (-1.0 / float(total_b))
        out_ref[...] = jnp.sum(w_ref[...] * mean_ce, axis=1, keepdims=True)


def _vmem_limit_bytes():
    """Per-chip VMEM budget: ~3/4 of capacity (48 MiB-class on v7x, ~96 on v5e/v6e)."""
    try:
        cap = int(pltpu.get_tpu_info().vmem_capacity_bytes)
    except Exception:
        cap = 64 * 1024 * 1024   # conservative (v7x per-TC VMEM)
    return max(32 * 1024 * 1024, (cap * 3) // 4)


@functools.partial(jax.jit, static_argnames=("block_rows",))
def adaptive_cross_entropy_loss(logits, targets, batch_cfm, var_factor, *,
                                block_rows=None):
    """Adaptive CE loss.

    `targets` is either dense one-hot / soft labels (B, C) — module semantics —
    or hard int labels (B,) for the reduced-HBM-traffic fast path.
    """
    B, C = logits.shape
    labels_mode = (targets.ndim == 1)
    if not labels_mode:
        assert targets.shape == (B, C)
    assert batch_cfm.shape == (C, C)

    vf = jnp.asarray(var_factor, jnp.float32)

    # ---- confusion-matrix class-weight math (tiny, O(C^2)) in plain XLA ----
    cfm = batch_cfm.astype(jnp.float32)
    num_classes = float(C)
    class_counts = jnp.sum(cfm, axis=1) + _EPSILON
    batch_total = jnp.sum(cfm)
    dist_w = (1.0 - class_counts / batch_total) / (num_classes - 1.0)
    dist_w = dist_w * num_classes + _EPSILON
    prec_w = 1.0 - jnp.diagonal(cfm) / class_counts
    prec_w = prec_w / jnp.sum(prec_w) * num_classes + _EPSILON
    adaptive_w = dist_w * prec_w + _EPSILON
    mean_w = jnp.mean(adaptive_w)
    adaptive_w = mean_w + (adaptive_w - mean_w) * vf
    # PyTorch's host-side `if var_factor == 0.0: adaptive_weight = 1.0`,
    # as a traced select (same forward value).
    adaptive_w = jnp.where(vf == 0.0, jnp.ones_like(adaptive_w), adaptive_w)
    adaptive_w = adaptive_w.reshape(1, C).astype(jnp.float32)

    # ---- batch tile size from a VMEM byte budget (lane-padded widths) ----
    vmem_limit = _vmem_limit_bytes()
    padded_c = ((C + 127) // 128) * 128
    if labels_mode:
        targets_2d = targets.astype(jnp.int32).reshape(B, 1)
        per_row = padded_c * logits.dtype.itemsize + 128 * 4      # logits + (.,1) labels
    else:
        targets_2d = targets
        per_row = padded_c * (logits.dtype.itemsize + targets.dtype.itemsize)
    per_row *= 2                                                  # double buffering
    stream_budget = vmem_limit // 2                               # headroom for scratch etc.
    tile_b = max(8, stream_budget // per_row)
    tile_b = min(tile_b, 16384)
    if block_rows is not None:
        tile_b = min(tile_b, int(block_rows))
    if tile_b >= B:
        tile_b = B                       # single full-batch tile (no tail, no mask)
    else:
        tile_b = max(8, (tile_b // 8) * 8)

    nt = -(-B // tile_b)
    has_tail = (B % tile_b) != 0
    acc_rows = 8 if (tile_b % 8 == 0) else 1

    kernel = functools.partial(_ace_kernel, total_b=B,
                               labels_mode=labels_mode, has_tail=has_tail)
    data_map = lambda i: (i, 0)

    bytes_accessed = (logits.size * logits.dtype.itemsize
                      + targets_2d.size * targets_2d.dtype.itemsize
                      + C * 4 + 4)
    cost = pl.CostEstimate(flops=8 * B * C, transcendentals=B * C + B,
                           bytes_accessed=bytes_accessed)

    out = pl.pallas_call(
        kernel,
        out_shape=jax.ShapeDtypeStruct((1, 1), jnp.float32),
        grid=(nt,),
        in_specs=[
            pl.BlockSpec((1, C), lambda i: (0, 0)),                 # adaptive_w (resident)
            pl.BlockSpec((tile_b, C), data_map),                    # logits stream
            pl.BlockSpec((tile_b, 1) if labels_mode else (tile_b, C), data_map),
        ],
        out_specs=pl.BlockSpec((1, 1), lambda i: (0, 0)),
        scratch_shapes=[pltpu.VMEM((acc_rows, C), jnp.float32)],    # CE accumulator
        compiler_params=pltpu.CompilerParams(
            dimension_semantics=("arbitrary",),
            vmem_limit_bytes=vmem_limit),
        cost_estimate=cost,
    )(adaptive_w, logits, targets_2d)

    return out[0, 0]


def _reference(logits, one_hot_labels, batch_cfm, var_factor):
    """Pure-JAX mirror of the PyTorch forward (for correctness checking)."""
    logits = logits.astype(jnp.float32)
    one_hot_labels = one_hot_labels.astype(jnp.float32)
    batch_cfm = batch_cfm.astype(jnp.float32)
    class_counts = jnp.sum(batch_cfm, axis=1) + _EPSILON
    batch_size = jnp.sum(batch_cfm)
    num_classes = float(batch_cfm.shape[0])
    dist_w = (1.0 - class_counts / batch_size) / (num_classes - 1.0)
    dist_w = dist_w * num_classes + _EPSILON
    prec_w = 1.0 - jnp.diagonal(batch_cfm) / class_counts
    prec_w = prec_w / jnp.sum(prec_w) * num_classes + _EPSILON
    adaptive_w = dist_w * prec_w + _EPSILON
    mean_w = jnp.mean(adaptive_w)
    adaptive_w = mean_w + (adaptive_w - mean_w) * var_factor
    adaptive_w = jnp.where(var_factor == 0.0, jnp.ones_like(adaptive_w), adaptive_w)
    log_prob = jax.nn.log_softmax(logits, axis=1)
    mean_ce = jnp.mean(-1.0 * one_hot_labels * log_prob, axis=0)
    return jnp.sum(adaptive_w * mean_ce)


if __name__ == "__main__":
    key = jax.random.PRNGKey(0)
    k1, k2, k3, k4, k5, k6 = jax.random.split(key, 6)
    C = 8  # num_classes

    def make_inputs(kl, kk, kc, B, dtype):
        logits = jax.random.normal(kl, (B, C), dtype=jnp.float32).astype(dtype)
        labels = jax.random.randint(kk, (B,), 0, C, dtype=jnp.int32)
        one_hot = jax.nn.one_hot(labels, C, dtype=dtype)
        cfm = jax.random.randint(kc, (C, C), 0, 6).astype(jnp.float32)
        return logits, labels, one_hot, cfm

    ok = True
    cases = [
        # (inputs, block_rows override, use hard-label fast path)
        (make_inputs(k1, k2, k3, 16, jnp.float32), None, False),  # single full tile, dense
        (make_inputs(k4, k5, k6, 12, jnp.float32), 8, False),     # multi-tile + masked tail, dense
        (make_inputs(k4, k5, k6, 12, jnp.float32), 8, True),      # multi-tile, int-label fast path
        (make_inputs(k1, k2, k3, 16, jnp.bfloat16), None, True),  # bf16 streaming, int-label path
    ]

    for (logits, labels, one_hot, cfm), block_rows, use_labels in cases:
        for vf in (0.7, 0.0):  # scaled-weight path and var_factor==0 path
            targets = labels if use_labels else one_hot
            got = jax.block_until_ready(
                adaptive_cross_entropy_loss(logits, targets, cfm, vf,
                                            block_rows=block_rows))
            want = _reference(logits, one_hot, cfm, jnp.float32(vf))
            if not jnp.allclose(got, want, rtol=1e-5, atol=1e-5):
                ok = False
                print("MISMATCH B=", logits.shape[0], "block_rows=", block_rows,
                      "labels_mode=", use_labels, "dtype=", logits.dtype,
                      "var_factor=", vf, "got", got, "want", want)

    if ok:
        print("KERNEL_OK")
</pallas_src>

<mosaic_0001>
module attributes {stable_mosaic.version = 11 : i64} {
  func.func @_ace_kernel(%arg0: i32, %arg1: memref<1x8xf32, #tpu.memory_space<vmem>>, %arg2: memref<16x8xf32, #tpu.memory_space<vmem>>, %arg3: memref<16x8xf32, #tpu.memory_space<vmem>>, %arg4: memref<1x1xf32, #tpu.memory_space<vmem>>, %arg5: memref<8x8xf32, #tpu.memory_space<vmem>>) attributes {dimension_semantics = [#tpu.dimension_semantics<arbitrary>], iteration_bounds = array<i64: 1>, scalar_prefetch = 0 : i64, scratch_operands = 1 : i64, tpu.core_type = #tpu.core_type<tc>, window_params = [{pipeline_mode = #tpu.pipeline_mode<synchronous>, transform_indices = @transform_0, window_bounds = array<i64: 1, 8>}, {transform_indices = @transform_1, window_bounds = array<i64: 16, 8>}, {transform_indices = @transform_2, window_bounds = array<i64: 16, 8>}, {pipeline_mode = #tpu.pipeline_mode<synchronous>, transform_indices = @transform_3, window_bounds = array<i64: 1, 1>}]} {
    %c0_i32 = arith.constant 0 : i32
    %0 = arith.cmpi eq, %arg0, %c0_i32 : i32
    %1 = arith.extui %0 : i1 to i32
    %c0_i32_0 = arith.constant 0 : i32
    %2 = arith.cmpi ne, %1, %c0_i32_0 : i32
    scf.if %2 {
      %cst_12 = arith.constant 0.000000e+00 : f32
      %24 = vector.broadcast %cst_12 : f32 to vector<8x8xf32>
      %c0_13 = arith.constant 0 : index
      %c0_14 = arith.constant 0 : index
      %25 = vector.load %arg5[%c0_13, %c0_14] : memref<8x8xf32, #tpu.memory_space<vmem>>, vector<8x8xf32>
      tpu.vector_store %arg5[%c0_13, %c0_14], %24 {strides = array<i32>} : memref<8x8xf32, #tpu.memory_space<vmem>>, vector<8x8xf32>,
    } else {
    }
    %c0 = arith.constant 0 : index
    %c0_1 = arith.constant 0 : index
    %3 = vector.load %arg2[%c0, %c0_1] : memref<16x8xf32, #tpu.memory_space<vmem>>, vector<16x8xf32>
    %cst = arith.constant dense<0xFF800000> : vector<16xf32>
    %4 = vector.multi_reduction <maximumf>, %3, %cst [1] : vector<16x8xf32> to vector<16xf32>
    %5 = vector.shape_cast %4 : vector<16xf32> to vector<16x1xf32>
    %6 = vector.broadcast %5 : vector<16x1xf32> to vector<16x8xf32>
    %7 = arith.subf %3, %6 : vector<16x8xf32>
    %8 = math.exp %7 : vector<16x8xf32>
    %cst_2 = arith.constant dense<0.000000e+00> : vector<16xf32>
    %9 = vector.multi_reduction <add>, %8, %cst_2 [1] : vector<16x8xf32> to vector<16xf32>
    %10 = vector.shape_cast %9 : vector<16xf32> to vector<16x1xf32>
    %11 = math.log %10 : vector<16x1xf32>
    %12 = vector.broadcast %11 : vector<16x1xf32> to vector<16x8xf32>
    %13 = arith.subf %7, %12 : vector<16x8xf32>
    %c0_3 = arith.constant 0 : index
    %c0_4 = arith.constant 0 : index
    %14 = vector.load %arg3[%c0_3, %c0_4] : memref<16x8xf32, #tpu.memory_space<vmem>>, vector<16x8xf32>
    %15 = arith.mulf %14, %13 : vector<16x8xf32>
    %c0_5 = arith.constant 0 : index
    %c0_6 = arith.constant 0 : index
    %16 = vector.load %arg5[%c0_5, %c0_6] : memref<8x8xf32, #tpu.memory_space<vmem>>, vector<8x8xf32>
    %17 = vector.shape_cast %15 : vector<16x8xf32> to vector<2x8x8xf32>
    %cst_7 = arith.constant dense<0.000000e+00> : vector<8x8xf32>
    %18 = vector.multi_reduction <add>, %17, %cst_7 [0] : vector<2x8x8xf32> to vector<8x8xf32>
    %19 = arith.addf %16, %18 : vector<8x8xf32>
    %c0_8 = arith.constant 0 : index
    %c0_9 = arith.constant 0 : index
    %20 = vector.load %arg5[%c0_8, %c0_9] : memref<8x8xf32, #tpu.memory_space<vmem>>, vector<8x8xf32>
    tpu.vector_store %arg5[%c0_8, %c0_9], %19 {strides = array<i32>} : memref<8x8xf32, #tpu.memory_space<vmem>>, vector<8x8xf32>,
    %c0_i32_10 = arith.constant 0 : i32
    %21 = arith.cmpi eq, %arg0, %c0_i32_10 : i32
    %22 = arith.extui %21 : i1 to i32
    %c0_i32_11 = arith.constant 0 : i32
    %23 = arith.cmpi ne, %22, %c0_i32_11 : i32
    scf.if %23 {
      %c0_12 = arith.constant 0 : index
      %c0_13 = arith.constant 0 : index
      %24 = vector.load %arg5[%c0_12, %c0_13] : memref<8x8xf32, #tpu.memory_space<vmem>>, vector<8x8xf32>
      %cst_14 = arith.constant dense<0.000000e+00> : vector<8xf32>
      %25 = vector.multi_reduction <add>, %24, %cst_14 [0] : vector<8x8xf32> to vector<8xf32>
      %26 = vector.shape_cast %25 : vector<8xf32> to vector<1x8xf32>
      %cst_15 = arith.constant -6.250000e-02 : f32
      %27 = vector.broadcast %cst_15 : f32 to vector<1x8xf32>
      %28 = arith.mulf %26, %27 : vector<1x8xf32>
      %c0_16 = arith.constant 0 : index
      %c0_17 = arith.constant 0 : index
      %29 = vector.load %arg1[%c0_16, %c0_17] : memref<1x8xf32, #tpu.memory_space<vmem>>, vector<1x8xf32>
      %30 = arith.mulf %29, %28 : vector<1x8xf32>
      %cst_18 = arith.constant dense<0.000000e+00> : vector<1xf32>
      %31 = vector.multi_reduction <add>, %30, %cst_18 [1] : vector<1x8xf32> to vector<1xf32>
      %32 = vector.shape_cast %31 : vector<1xf32> to vector<1x1xf32>
      %c0_19 = arith.constant 0 : index
      %c0_20 = arith.constant 0 : index
      %33 = vector.load %arg4[%c0_19, %c0_20] : memref<1x1xf32, #tpu.memory_space<vmem>>, vector<1x1xf32>
      tpu.vector_store %arg4[%c0_19, %c0_20], %32 {strides = array<i32>} : memref<1x1xf32, #tpu.memory_space<vmem>>, vector<1x1xf32>,
    } else {
    }
    return
  }
  func.func @transform_0(%arg0: i32) -> (i32, i32) {
    %c0_i32 = arith.constant 0 : i32
    %c0_i32_0 = arith.constant 0 : i32
    %c0_i32_1 = arith.constant 0 : i32
    return %c0_i32, %c0_i32_0 : i32, i32
  }
  func.func @transform_1(%arg0: i32) -> (i32, i32) {
    %c0_i32 = arith.constant 0 : i32
    %c0_i32_0 = arith.constant 0 : i32
    return %arg0, %c0_i32 : i32, i32
  }
  func.func @transform_2(%arg0: i32) -> (i32, i32) {
    %c0_i32 = arith.constant 0 : i32
    %c0_i32_0 = arith.constant 0 : i32
    return %arg0, %c0_i32 : i32, i32
  }
  func.func @transform_3(%arg0: i32) -> (i32, i32) {
    %c0_i32 = arith.constant 0 : i32
    %c0_i32_0 = arith.constant 0 : i32
    %c0_i32_1 = arith.constant 0 : i32
    return %c0_i32, %c0_i32_0 : i32, i32
  }
}

</mosaic_0001>

<llo_original>
// kernel: adaptive_cross_entropy_loss.1
$region0: #{adaptive_cross_entropy_loss.1}
  #allocation0 [shape = 'u32[]', space=smem, size = 0x4, offset = 0x4, fixed_abs, tag = 'smem constant byte address 0x4 - core index']
  #allocation1 [shape = 'u32[144,128]{1,0:T(1,128)}', space=vmem, size = 0x12000, scoped, tag = 'internal scratch']
  #allocation2 [shape = 'f32[8,8]{1,0:T(8,128)}', space=vmem, size = 0x1000, scoped, tag = 'scratch operand']
  %s0 = inlined_call_operand.vmem [shape: f32[1,8], index: 0, kind: input, shape index: {}]
  %s1 = inlined_call_operand.vmem [shape: f32[16,8], index: 1, kind: input, shape index: {}]
  %s2 = inlined_call_operand.vmem [shape: f32[16,8], index: 2, kind: input, shape index: {}]
  %s3 = inlined_call_operand.hbm [shape: f32[1,1], index: 3, kind: output, shape index: {}]
  %s4 = sld [smem:[#allocation0]]
  $region30: #{adaptive_cross_entropy_loss.1} parent=0
    _
  %s6 = ssub.s32 1, %s4
  %s7 = scalar_select 0, %s6, %s4
  $region1: #{adaptive_cross_entropy_loss.1} parent=0
    #allocation3 [shape = 'u8[512]{0}', space=vmem, size = 0x400, scoped, tag = 'output window, operand 0, single buffered']
    #allocation4 [shape = 's32[1]{0}', space=sflag, size = 0x4, scoped, tag = 'scoped memory for adaptive_cross_entropy_loss.1']
    %8 = vsyncpa [#allocation4], 0
    // Predicated region
    $region2: #{adaptive_cross_entropy_loss.1} parent=1 // pred_check
      _
    $region3: #{adaptive_cross_entropy_loss.1} parent=1 // pred_check_branch
      %10 = sbr.rel (0) target = $region5
    $region4: #{adaptive_cross_entropy_loss.1} parent=1 // pred_region
      _
    $region5: #{adaptive_cross_entropy_loss.1} parent=1 // pred_fallthru
      _
    // Predicated region
    $region6: #{adaptive_cross_entropy_loss.1} parent=1 // pred_check
      _
    $region7: #{adaptive_cross_entropy_loss.1} parent=1 // pred_check_branch
      %12 = sbr.rel (0) target = $region9
    $region8: #{adaptive_cross_entropy_loss.1} parent=1 // pred_region
      _
    $region9: #{adaptive_cross_entropy_loss.1} parent=1 // pred_fallthru
      _
    // Predicated region
    $region10: #{adaptive_cross_entropy_loss.1} parent=1 // pred_check
      _
    $region11: #{adaptive_cross_entropy_loss.1} parent=1 // pred_check_branch
      %14 = sbr.rel (0) target = $region13
    $region12: #{adaptive_cross_entropy_loss.1} parent=1 // pred_region
      _
    $region13: #{adaptive_cross_entropy_loss.1} parent=1 // pred_fallthru
      _
    %p15 = scmp.eq.s32.totalorder 0, 0
    // Predicated region
    $region14: #{adaptive_cross_entropy_loss.1} parent=1 // pred_check
      %p16 = pneg %p15
    $region15: #{adaptive_cross_entropy_loss.1} parent=1 // pred_check_branch
      %18 = sbr.rel (%p16) target = $region17
    $region16: #{adaptive_cross_entropy_loss.1} parent=1 // pred_region
      %vm19 = vcmask 64512
      %20 = vst.msk [vmem:[#allocation2] sm:$0xff] %vm19, 0.0
    $region17: #{adaptive_cross_entropy_loss.1} parent=1 // pred_fallthru
      _
    %v21 = vld [vmem:[%s1] sm:$0xff]
    %v22 = vld [vmem:[%s1 + $0x8] sm:$0xff]
    %vm23 = vcmask 64512
    %v24 = vsel %vm23, %v21, -inf
    %25 = vmax.xlane.f32.xlu0 %v24
    %v26 = vpop.xlane.xlu0 %25
    %v27 = vsel %vm23, %v22, -inf
    %28 = vmax.xlane.f32.xlu0 %v27
    %v29 = vpop.xlane.xlu0 %28
    %v30 = vsub.f32 %v21, %v26
    %v31 = vsub.f32 %v22, %v29
    %v32 = vmul.f32 %v30, 1.442695
    %v33 = vpow.pop %v32
    %v34 = vmul.f32 %v31, 1.442695
    %v35 = vpow.pop %v34
    %v36 = vsel %vm23, %v33, 0.0
    %37 = vadd.xlane.f32.xlu0 %v36
    %v38 = vpop.xlane.xlu0 %37
    %v39 = vsel %vm23, %v35, 0.0
    %40 = vadd.xlane.f32.xlu0 %v39
    %v41 = vpop.xlane.xlu0 %40
    %v42 = vlog2.pop %v38
    %v43 = vmul.f32 %v42, 0.6931472
    %v44 = vlog2.pop %v41
    %v45 = vmul.f32 %v44, 0.6931472
    %v46 = vsub.f32 %v30, %v43
    %v47 = vsub.f32 %v31, %v45
    %v48 = vld [vmem:[%s2] sm:$0xff]
    %v49 = vld [vmem:[%s2 + $0x8] sm:$0xff]
    %v50 = vmul.f32 %v48, %v46
    %v51 = vmul.f32 %v49, %v47
    %v52 = vld [vmem:[#allocation2] sm:$0xff]
    %v53 = vsel %vm23, %v50, 0.0
    %v54 = vsel %vm23, %v51, 0.0
    %v55 = vadd.f32 %v53, %v54
    %v56 = vadd.f32 %v52, %v55
    %57 = vst.msk [vmem:[#allocation2] sm:$0xff] %vm23, %v56
    // Predicated region
    $region18: #{adaptive_cross_entropy_loss.1} parent=1 // pred_check
      %p58 = pneg %p15
    $region19: #{adaptive_cross_entropy_loss.1} parent=1 // pred_check_branch
      %60 = sbr.rel (%p58) target = $region21
    $region20: #{adaptive_cross_entropy_loss.1} parent=1 // pred_region
      %v61 = vld [vmem:[#allocation2] sm:$0xff]
      %v62 = vsel %vm23, %v61, 0.0
      %v63 = vrot.slane %v62, 4
      %v64 = vadd.f32 %v62, %v63
      %v65 = vrot.slane %v64, 2
      %v66 = vadd.f32 %v64, %v65
      %v67 = vrot.slane %v66, 1
      %v68 = vadd.f32 %v66, %v67
      %v69 = vmul.f32 %v68, -0.0625
      %v70 = vld [vmem:[%s0] sm:$0x1]
      %v71 = vmul.f32 %v70, %v69
      %vm72 = vcmask 57344
      %v73 = vsel %vm72, %v71, 0.0
      %74 = vadd.xlane.f32.xlu0 %v73
      %v75 = vpop.xlane.xlu0 %74
      %vm76 = vcmask 0
      %77 = vst.msk [vmem:[#allocation3] sm:$0x1] %vm76, %v75
    $region21: #{adaptive_cross_entropy_loss.1} parent=1 // pred_fallthru
      _
    // Predicated region
    $region22: #{adaptive_cross_entropy_loss.1} parent=1 // pred_check
      _
    $region23: #{adaptive_cross_entropy_loss.1} parent=1 // pred_check_branch
      %79 = sbr.rel (0) target = $region25
    $region24: #{adaptive_cross_entropy_loss.1} parent=1 // pred_region
      %s81 = ssub.s32 16, 16
      %82 = vsyncadd [#allocation4], %s81
      %s84 = sshll.u32 [#allocation3], 4
      %s85 = int_to_ptr.vmem [resolvable:$true] %s84
      %87 = dma.vmem_to_hbm [thread:$0]  %s85, 16, %s3, [#allocation4]
    $region25: #{adaptive_cross_entropy_loss.1} parent=1 // pred_fallthru
      _
    // Predicated region
    $region26: #{adaptive_cross_entropy_loss.1} parent=1 // pred_check
      _
    $region27: #{adaptive_cross_entropy_loss.1} parent=1 // pred_check_branch
      %89 = sbr.rel (0) target = $region29
    $region28: #{adaptive_cross_entropy_loss.1} parent=1 // pred_region
      %90 = dma.done [#allocation4], 16
    $region29: #{adaptive_cross_entropy_loss.1} parent=1 // pred_fallthru
      _
    %91 = vsyncpa [#allocation4], 1

</llo_original>
